<compile_context>
chip_gen: v6e
topology: v6e:2x2x1
jax: 0.10.0
libtpu: 0.0.40
codegen_flags: <defaults>
</compile_context>

<pallas_src>
import jax
import jax.numpy as jnp
from jax.experimental import pallas as pl
from jax.experimental.pallas import tpu as pltpu

EPS = 1e-5          # nn.LayerNorm default eps
_LANE = 128
_MIN_TILE_T = 512   # measured: <512-lane tiles give back 15-35% of HBM roofline
_MAX_TILE_T = 4096


def _cln_kernel(x_ref, gamma_ref, beta_ref, o_ref):
    # x_ref: (blk_n, C, blk_t) — channels on sublanes (axis 1), time on lanes.
    # gamma_ref / beta_ref: (1, C, 1), already float32.
    x = x_ref[...]
    xf = x if x.dtype == jnp.float32 else x.astype(jnp.float32)
    mean = jnp.mean(xf, axis=1, keepdims=True)
    centered = xf - mean
    var = jnp.mean(centered * centered, axis=1, keepdims=True)  # biased, as in LayerNorm
    inv = jax.lax.rsqrt(var + EPS)
    o_ref[...] = (centered * inv * gamma_ref[...] + beta_ref[...]).astype(o_ref.dtype)


def _vmem_capacity_bytes():
    try:
        return int(pltpu.get_tpu_info().vmem_capacity_bytes)
    except Exception:
        return 64 * 1024 * 1024  # conservative default (v7x per-TC)


@jax.jit
def channelwise_layernorm(x, gamma, beta):
    """x: (N, C, T); gamma, beta: (C,). Returns (N, C, T), normalized over C."""
    N, C, T = x.shape
    itemsize = jnp.dtype(x.dtype).itemsize

    cap = _vmem_capacity_bytes()
    # Per-element block footprint: double-buffered in + out (4*itemsize) plus an
    # allowance of ~4 full-size f32 temporaries materialized by the body.
    bytes_per_elem = 4 * itemsize + 4 * 4
    budget = min(48 * 1024 * 1024, (cap * 3) // 4)

    # Params cast to compute dtype once, shaped to broadcast over (blk_n, C, blk_t).
    gamma3d = gamma.astype(jnp.float32).reshape(1, C, 1)
    beta3d = beta.astype(jnp.float32).reshape(1, C, 1)

    if T >= _MIN_TILE_T:
        # Large-T regime: full-C blocks, T tiled on lanes -> lane-dense stores.
        per_lane = C * bytes_per_elem
        max_tile = (budget // per_lane // _LANE) * _LANE
        tile_t = max(_MIN_TILE_T, min(_MAX_TILE_T, max_tile))
        if tile_t * per_lane > (cap * 3) // 4:
            # Pathologically large C: shrink to what physically fits (lane-multiple).
            tile_t = max(_LANE, (((cap * 3) // 4) // per_lane // _LANE) * _LANE)
        if T <= tile_t:
            tile_t = T  # full-extent block is always a legal block shape
        block = (1, C, tile_t)
        grid = (N, pl.cdiv(T, tile_t))  # ragged last T block handled by Pallas
        in_specs = [
            pl.BlockSpec(block, lambda n, t: (n, 0, t)),
            pl.BlockSpec((1, C, 1), lambda n, t: (0, 0, 0)),
            pl.BlockSpec((1, C, 1), lambda n, t: (0, 0, 0)),
        ]
        out_spec = pl.BlockSpec(block, lambda n, t: (n, 0, t))
        semantics = ("parallel", "parallel")
    else:
        # Small-T regime: batch several N per block to amortize per-step overhead
        # and avoid tiny DMAs / one micro-block per batch.
        # TODO(synk): for T < 128 the lane axis is still narrow (masked vst.msk);
        # a true fix would re-layout the tensor, which changes the memory contract.
        per_batch = max(C * T * bytes_per_elem, 1)
        tile_n = max(1, min(N, budget // per_batch))
        block = (tile_n, C, T)
        grid = (pl.cdiv(N, tile_n),)
        in_specs = [
            pl.BlockSpec(block, lambda i: (i, 0, 0)),
            pl.BlockSpec((1, C, 1), lambda i: (0, 0, 0)),
            pl.BlockSpec((1, C, 1), lambda i: (0, 0, 0)),
        ]
        out_spec = pl.BlockSpec(block, lambda i: (i, 0, 0))
        semantics = ("parallel",)

    # Declare the real VMEM footprint: double-buffered IO + f32 body temps + slack.
    block_elems = block[0] * block[1] * block[2]
    vmem_limit = 4 * block_elems * itemsize + 4 * block_elems * 4 + (2 << 20)
    vmem_limit = int(min(cap, max(vmem_limit, 32 << 20)))

    cost = pl.CostEstimate(
        flops=7 * N * C * T,
        transcendentals=N * T,
        bytes_accessed=2 * N * C * T * itemsize + 2 * C * 4,
    )

    return pl.pallas_call(
        _cln_kernel,
        out_shape=jax.ShapeDtypeStruct((N, C, T), x.dtype),
        grid_spec=pl.GridSpec(
            grid=grid,
            in_specs=in_specs,
            out_specs=out_spec,
        ),
        compiler_params=pltpu.CompilerParams(
            dimension_semantics=semantics,
            vmem_limit_bytes=vmem_limit,
        ),
        cost_estimate=cost,
    )(x, gamma3d, beta3d)


def _reference(x, gamma, beta):
    # Pure-JAX reference matching nn.LayerNorm(C) applied over the channel axis.
    xt = jnp.transpose(x, (0, 2, 1)).astype(jnp.float32)  # (N, T, C)
    mean = jnp.mean(xt, axis=-1, keepdims=True)
    var = jnp.mean((xt - mean) ** 2, axis=-1, keepdims=True)
    y = (xt - mean) / jnp.sqrt(var + EPS)
    y = y * gamma.astype(jnp.float32) + beta.astype(jnp.float32)
    return jnp.transpose(y, (0, 2, 1)).astype(x.dtype)


if __name__ == "__main__":
    key = jax.random.PRNGKey(0)
    k1, k2, k3, k4, k5 = jax.random.split(key, 5)

    # Case 1: small module-consistent shapes (batch=2, channels=32, seq=16),
    # non-trivial affine params -> small-T regime (N blocked per step).
    N, C, T = 2, 32, 16
    x = jax.random.normal(k1, (N, C, T), dtype=jnp.float32)
    gamma = 1.0 + 0.1 * jax.random.normal(k2, (C,), dtype=jnp.float32)
    beta = 0.1 * jax.random.normal(k3, (C,), dtype=jnp.float32)
    out = jax.block_until_ready(channelwise_layernorm(x, gamma, beta))
    ref = _reference(x, gamma, beta)
    assert out.shape == (N, C, T)
    assert jnp.allclose(out, ref, atol=1e-5, rtol=1e-5)

    # Case 2: bf16 input (exercises dtype-aware sizing + f32 cast path), T < 512.
    N2, C2, T2 = 3, 48, 200
    x2 = jax.random.normal(k4, (N2, C2, T2), dtype=jnp.float32).astype(jnp.bfloat16)
    g2 = jnp.ones((C2,), dtype=jnp.float32)
    b2 = jnp.zeros((C2,), dtype=jnp.float32)
    out2 = jax.block_until_ready(channelwise_layernorm(x2, g2, b2))
    ref2 = _reference(x2, g2, b2)
    assert out2.shape == (N2, C2, T2)
    assert jnp.max(jnp.abs(out2.astype(jnp.float32) - ref2.astype(jnp.float32))) < 5e-2

    # Case 3: long T -> tiled-T regime with a ragged last lane block.
    N3, C3, T3 = 2, 8, 4500
    x3 = jax.random.normal(k5, (N3, C3, T3), dtype=jnp.float32)
    g3 = 1.0 + 0.05 * jnp.arange(C3, dtype=jnp.float32)
    b3 = 0.01 * jnp.arange(C3, dtype=jnp.float32)
    out3 = jax.block_until_ready(channelwise_layernorm(x3, g3, b3))
    ref3 = _reference(x3, g3, b3)
    assert out3.shape == (N3, C3, T3)
    assert jnp.allclose(out3, ref3, atol=1e-5, rtol=1e-5)

    print("KERNEL_OK")
</pallas_src>

<mosaic_0001>
module attributes {stable_mosaic.version = 11 : i64} {
  func.func @_cln_kernel(%arg0: i32, %arg1: memref<2x32x16xf32, #tpu.memory_space<vmem>>, %arg2: memref<1x32x1xf32, #tpu.memory_space<vmem>>, %arg3: memref<1x32x1xf32, #tpu.memory_space<vmem>>, %arg4: memref<2x32x16xf32, #tpu.memory_space<vmem>>) attributes {dimension_semantics = [#tpu.dimension_semantics<parallel>], iteration_bounds = array<i64: 1>, scalar_prefetch = 0 : i64, scratch_operands = 0 : i64, tpu.core_type = #tpu.core_type<tc>, window_params = [{transform_indices = @transform_0, window_bounds = array<i64: 2, 32, 16>}, {pipeline_mode = #tpu.pipeline_mode<synchronous>, transform_indices = @transform_1, window_bounds = array<i64: 1, 32, 1>}, {pipeline_mode = #tpu.pipeline_mode<synchronous>, transform_indices = @transform_2, window_bounds = array<i64: 1, 32, 1>}, {transform_indices = @transform_3, window_bounds = array<i64: 2, 32, 16>}]} {
    %c0 = arith.constant 0 : index
    %c0_0 = arith.constant 0 : index
    %c0_1 = arith.constant 0 : index
    %0 = vector.load %arg1[%c0, %c0_0, %c0_1] : memref<2x32x16xf32, #tpu.memory_space<vmem>>, vector<2x32x16xf32>
    %cst = arith.constant dense<0.000000e+00> : vector<2x16xf32>
    %1 = vector.multi_reduction <add>, %0, %cst [1] : vector<2x32x16xf32> to vector<2x16xf32>
    %2 = vector.shape_cast %1 : vector<2x16xf32> to vector<2x1x16xf32>
    %cst_2 = arith.constant 3.200000e+01 : f32
    %3 = vector.broadcast %cst_2 : f32 to vector<2x1x16xf32>
    %4 = arith.divf %2, %3 : vector<2x1x16xf32>
    %5 = vector.broadcast %4 : vector<2x1x16xf32> to vector<2x32x16xf32>
    %6 = arith.subf %0, %5 : vector<2x32x16xf32>
    %7 = arith.mulf %6, %6 : vector<2x32x16xf32>
    %cst_3 = arith.constant dense<0.000000e+00> : vector<2x16xf32>
    %8 = vector.multi_reduction <add>, %7, %cst_3 [1] : vector<2x32x16xf32> to vector<2x16xf32>
    %9 = vector.shape_cast %8 : vector<2x16xf32> to vector<2x1x16xf32>
    %cst_4 = arith.constant 3.200000e+01 : f32
    %10 = vector.broadcast %cst_4 : f32 to vector<2x1x16xf32>
    %11 = arith.divf %9, %10 : vector<2x1x16xf32>
    %cst_5 = arith.constant 9.99999974E-6 : f32
    %12 = vector.broadcast %cst_5 : f32 to vector<2x1x16xf32>
    %13 = arith.addf %11, %12 : vector<2x1x16xf32>
    %14 = math.rsqrt %13 : vector<2x1x16xf32>
    %15 = vector.broadcast %14 : vector<2x1x16xf32> to vector<2x32x16xf32>
    %16 = arith.mulf %6, %15 : vector<2x32x16xf32>
    %c0_6 = arith.constant 0 : index
    %c0_7 = arith.constant 0 : index
    %c0_8 = arith.constant 0 : index
    %17 = vector.load %arg2[%c0_6, %c0_7, %c0_8] : memref<1x32x1xf32, #tpu.memory_space<vmem>>, vector<1x32x1xf32>
    %18 = vector.broadcast %17 : vector<1x32x1xf32> to vector<2x32x16xf32>
    %19 = arith.mulf %16, %18 : vector<2x32x16xf32>
    %c0_9 = arith.constant 0 : index
    %c0_10 = arith.constant 0 : index
    %c0_11 = arith.constant 0 : index
    %20 = vector.load %arg3[%c0_9, %c0_10, %c0_11] : memref<1x32x1xf32, #tpu.memory_space<vmem>>, vector<1x32x1xf32>
    %21 = vector.broadcast %20 : vector<1x32x1xf32> to vector<2x32x16xf32>
    %22 = arith.addf %19, %21 : vector<2x32x16xf32>
    %c0_12 = arith.constant 0 : index
    %c0_13 = arith.constant 0 : index
    %c0_14 = arith.constant 0 : index
    %23 = vector.load %arg4[%c0_12, %c0_13, %c0_14] : memref<2x32x16xf32, #tpu.memory_space<vmem>>, vector<2x32x16xf32>
    tpu.vector_store %arg4[%c0_12, %c0_13, %c0_14], %22 {strides = array<i32>} : memref<2x32x16xf32, #tpu.memory_space<vmem>>, vector<2x32x16xf32>,
    return
  }
  func.func @transform_0(%arg0: i32) -> (i32, i32, i32) {
    %c0_i32 = arith.constant 0 : i32
    %c0_i32_0 = arith.constant 0 : i32
    %c0_i32_1 = arith.constant 0 : i32
    return %arg0, %c0_i32, %c0_i32_0 : i32, i32, i32
  }
  func.func @transform_1(%arg0: i32) -> (i32, i32, i32) {
    %c0_i32 = arith.constant 0 : i32
    %c0_i32_0 = arith.constant 0 : i32
    %c0_i32_1 = arith.constant 0 : i32
    %c0_i32_2 = arith.constant 0 : i32
    return %c0_i32, %c0_i32_0, %c0_i32_1 : i32, i32, i32
  }
  func.func @transform_2(%arg0: i32) -> (i32, i32, i32) {
    %c0_i32 = arith.constant 0 : i32
    %c0_i32_0 = arith.constant 0 : i32
    %c0_i32_1 = arith.constant 0 : i32
    %c0_i32_2 = arith.constant 0 : i32
    return %c0_i32, %c0_i32_0, %c0_i32_1 : i32, i32, i32
  }
  func.func @transform_3(%arg0: i32) -> (i32, i32, i32) {
    %c0_i32 = arith.constant 0 : i32
    %c0_i32_0 = arith.constant 0 : i32
    %c0_i32_1 = arith.constant 0 : i32
    return %arg0, %c0_i32, %c0_i32_0 : i32, i32, i32
  }
}

</mosaic_0001>

<llo_original>
// kernel: channelwise_layernorm.1
$region0: #{channelwise_layernorm.1}
  #allocation0 [shape = 'u32[]', space=smem, size = 0x4, offset = 0x4, fixed_abs, tag = 'smem constant byte address 0x4 - core index']
  #allocation1 [shape = 'u32[144,128]{1,0:T(1,128)}', space=vmem, size = 0x12000, scoped, tag = 'internal scratch']
  %s0 = inlined_call_operand.vmem [shape: f32[2,32,16], index: 0, kind: input, shape index: {}]
  %s1 = inlined_call_operand.vmem [shape: f32[1,32,1], index: 1, kind: input, shape index: {}]
  %s2 = inlined_call_operand.vmem [shape: f32[1,32,1], index: 2, kind: input, shape index: {}]
  %s3 = inlined_call_operand.vmem [shape: f32[2,32,16], index: 3, kind: output, shape index: {}]
  %s4 = sld [smem:[#allocation0]]
  $region22: #{channelwise_layernorm.1} parent=0
    _
  %s6 = ssub.s32 1, %s4
  %s7 = scalar_select 0, %s6, %s4
  // Predicated region
  $region2: #{channelwise_layernorm.1} parent=0 // pred_check
    _
  $region3: #{channelwise_layernorm.1} parent=0 // pred_check_branch
    %9 = sbr.rel (0) target = $region5
  $region4: #{channelwise_layernorm.1} parent=0 // pred_region
    _
  $region5: #{channelwise_layernorm.1} parent=0 // pred_fallthru
    _
  // Predicated region
  $region6: #{channelwise_layernorm.1} parent=0 // pred_check
    _
  $region7: #{channelwise_layernorm.1} parent=0 // pred_check_branch
    %11 = sbr.rel (0) target = $region9
  $region8: #{channelwise_layernorm.1} parent=0 // pred_region
    _
  $region9: #{channelwise_layernorm.1} parent=0 // pred_fallthru
    _
  // Predicated region
  $region10: #{channelwise_layernorm.1} parent=0 // pred_check
    _
  $region11: #{channelwise_layernorm.1} parent=0 // pred_check_branch
    %13 = sbr.rel (0) target = $region13
  $region12: #{channelwise_layernorm.1} parent=0 // pred_region
    _
  $region13: #{channelwise_layernorm.1} parent=0 // pred_fallthru
    _
  %v14 = vld [vmem:[%s0] sm:$0xff]
  %v15 = vld [vmem:[%s0 + $0x8] sm:$0xff]
  %v16 = vld [vmem:[%s0 + $0x10] sm:$0xff]
  %v17 = vld [vmem:[%s0 + $0x18] sm:$0xff]
  %v18 = vld [vmem:[%s0 + $0x20] sm:$0xff]
  %v19 = vld [vmem:[%s0 + $0x28] sm:$0xff]
  %v20 = vld [vmem:[%s0 + $0x30] sm:$0xff]
  %v21 = vld [vmem:[%s0 + $0x38] sm:$0xff]
  %vm22 = vcmask 130048
  %v23 = vsel %vm22, %v14, 0.0
  %v24 = vsel %vm22, %v15, 0.0
  %v25 = vadd.f32 %v23, %v24
  %v26 = vsel %vm22, %v16, 0.0
  %v27 = vadd.f32 %v25, %v26
  %v28 = vsel %vm22, %v17, 0.0
  %v29 = vadd.f32 %v27, %v28
  %v30 = vrot.slane %v29, 4
  %v31 = vadd.f32 %v29, %v30
  %v32 = vrot.slane %v31, 2
  %v33 = vadd.f32 %v31, %v32
  %v34 = vrot.slane %v33, 1
  %v35 = vadd.f32 %v33, %v34
  %v36 = vsel %vm22, %v18, 0.0
  %v37 = vsel %vm22, %v19, 0.0
  %v38 = vadd.f32 %v36, %v37
  %v39 = vsel %vm22, %v20, 0.0
  %v40 = vadd.f32 %v38, %v39
  %v41 = vsel %vm22, %v21, 0.0
  %v42 = vadd.f32 %v40, %v41
  %v43 = vrot.slane %v42, 4
  %v44 = vadd.f32 %v42, %v43
  %v45 = vrot.slane %v44, 2
  %v46 = vadd.f32 %v44, %v45
  %v47 = vrot.slane %v46, 1
  %v48 = vadd.f32 %v46, %v47
  %v49 = vrcp.pop 32.0
  %v50 = vmul.f32 %v35, %v49
  %v51 = vmul.f32 %v48, %v49
  %v52 = vsub.f32 %v14, %v50
  %v53 = vsub.f32 %v15, %v50
  %v54 = vsub.f32 %v16, %v50
  %v55 = vsub.f32 %v17, %v50
  %v56 = vsub.f32 %v18, %v51
  %v57 = vsub.f32 %v19, %v51
  %v58 = vsub.f32 %v20, %v51
  %v59 = vsub.f32 %v21, %v51
  %v60 = vmul.f32 %v52, %v52
  %v61 = vmul.f32 %v53, %v53
  %v62 = vmul.f32 %v54, %v54
  %v63 = vmul.f32 %v55, %v55
  %v64 = vmul.f32 %v56, %v56
  %v65 = vmul.f32 %v57, %v57
  %v66 = vmul.f32 %v58, %v58
  %v67 = vmul.f32 %v59, %v59
  %v68 = vsel %vm22, %v60, 0.0
  %v69 = vsel %vm22, %v61, 0.0
  %v70 = vadd.f32 %v68, %v69
  %v71 = vsel %vm22, %v62, 0.0
  %v72 = vadd.f32 %v70, %v71
  %v73 = vsel %vm22, %v63, 0.0
  %v74 = vadd.f32 %v72, %v73
  %v75 = vrot.slane %v74, 4
  %v76 = vadd.f32 %v74, %v75
  %v77 = vrot.slane %v76, 2
  %v78 = vadd.f32 %v76, %v77
  %v79 = vrot.slane %v78, 1
  %v80 = vadd.f32 %v78, %v79
  %v81 = vsel %vm22, %v64, 0.0
  %v82 = vsel %vm22, %v65, 0.0
  %v83 = vadd.f32 %v81, %v82
  %v84 = vsel %vm22, %v66, 0.0
  %v85 = vadd.f32 %v83, %v84
  %v86 = vsel %vm22, %v67, 0.0
  %v87 = vadd.f32 %v85, %v86
  %v88 = vrot.slane %v87, 4
  %v89 = vadd.f32 %v87, %v88
  %v90 = vrot.slane %v89, 2
  %v91 = vadd.f32 %v89, %v90
  %v92 = vrot.slane %v91, 1
  %v93 = vadd.f32 %v91, %v92
  %v94 = vmul.f32 %v80, %v49
  %v95 = vmul.f32 %v93, %v49
  %v96 = vadd.f32 %v94, 1e-05
  %v97 = vadd.f32 %v95, 1e-05
  %v98 = vrsqrt.pop %v96
  %v99 = vrsqrt.pop %v97
  %v100 = vmul.f32 %v52, %v98
  %v101 = vmul.f32 %v53, %v98
  %v102 = vmul.f32 %v54, %v98
  %v103 = vmul.f32 %v55, %v98
  %v104 = vmul.f32 %v56, %v99
  %v105 = vmul.f32 %v57, %v99
  %v106 = vmul.f32 %v58, %v99
  %v107 = vmul.f32 %v59, %v99
  %v108 = vld [vmem:[%s1] sm:$0xff]
  %v109 = vld [vmem:[%s1 + $0x8] sm:$0xff]
  %v110 = vld [vmem:[%s1 + $0x10] sm:$0xff]
  %v111 = vld [vmem:[%s1 + $0x18] sm:$0xff]
  %113 = vset.pattern.permute.xlu0 0
  %114 = vperm.xlu0 %113, %v108
  %v115 = vpop.permute.xlu0 %114
  %118 = vset.pattern.permute.xlu0 0
  %119 = vperm.xlu0 %118, %v109
  %v120 = vpop.permute.xlu0 %119
  %123 = vset.pattern.permute.xlu0 0
  %124 = vperm.xlu0 %123, %v110
  %v125 = vpop.permute.xlu0 %124
  %128 = vset.pattern.permute.xlu0 0
  %129 = vperm.xlu0 %128, %v111
  %v130 = vpop.permute.xlu0 %129
  %v132 = vmul.f32 %v100, %v115
  %v133 = vmul.f32 %v101, %v120
  %v134 = vmul.f32 %v102, %v125
  %v135 = vmul.f32 %v103, %v130
  %v136 = vmul.f32 %v104, %v115
  %v137 = vmul.f32 %v105, %v120
  %v138 = vmul.f32 %v106, %v125
  %v139 = vmul.f32 %v107, %v130
  %v140 = vld [vmem:[%s2] sm:$0xff]
  %v141 = vld [vmem:[%s2 + $0x8] sm:$0xff]
  %v142 = vld [vmem:[%s2 + $0x10] sm:$0xff]
  %v143 = vld [vmem:[%s2 + $0x18] sm:$0xff]
  %145 = vset.pattern.permute.xlu0 0
  %146 = vperm.xlu0 %145, %v140
  %v147 = vpop.permute.xlu0 %146
  %150 = vset.pattern.permute.xlu0 0
  %151 = vperm.xlu0 %150, %v141
  %v152 = vpop.permute.xlu0 %151
  %155 = vset.pattern.permute.xlu0 0
  %156 = vperm.xlu0 %155, %v142
  %v157 = vpop.permute.xlu0 %156
  %160 = vset.pattern.permute.xlu0 0
  %161 = vperm.xlu0 %160, %v143
  %v162 = vpop.permute.xlu0 %161
  %v164 = vadd.f32 %v132, %v147
  %v165 = vadd.f32 %v133, %v152
  %v166 = vadd.f32 %v134, %v157
  %v167 = vadd.f32 %v135, %v162
  %v168 = vadd.f32 %v136, %v147
  %v169 = vadd.f32 %v137, %v152
  %v170 = vadd.f32 %v138, %v157
  %v171 = vadd.f32 %v139, %v162
  %172 = vst.msk [vmem:[%s3] sm:$0xff] %vm22, %v164
  %173 = vst.msk [vmem:[%s3 + $0x8] sm:$0xff] %vm22, %v165
  %174 = vst.msk [vmem:[%s3 + $0x10] sm:$0xff] %vm22, %v166
  %175 = vst.msk [vmem:[%s3 + $0x18] sm:$0xff] %vm22, %v167
  %176 = vst.msk [vmem:[%s3 + $0x20] sm:$0xff] %vm22, %v168
  %177 = vst.msk [vmem:[%s3 + $0x28] sm:$0xff] %vm22, %v169
  %178 = vst.msk [vmem:[%s3 + $0x30] sm:$0xff] %vm22, %v170
  %179 = vst.msk [vmem:[%s3 + $0x38] sm:$0xff] %vm22, %v171
  // Predicated region
  $region14: #{channelwise_layernorm.1} parent=0 // pred_check
    _
  $region15: #{channelwise_layernorm.1} parent=0 // pred_check_branch
    %181 = sbr.rel (0) target = $region17
  $region16: #{channelwise_layernorm.1} parent=0 // pred_region
    _
  $region17: #{channelwise_layernorm.1} parent=0 // pred_fallthru
    _
  // Predicated region
  $region18: #{channelwise_layernorm.1} parent=0 // pred_check
    _
  $region19: #{channelwise_layernorm.1} parent=0 // pred_check_branch
    %183 = sbr.rel (0) target = $region21
  $region20: #{channelwise_layernorm.1} parent=0 // pred_region
    _
  $region21: #{channelwise_layernorm.1} parent=0 // pred_fallthru
    _

</llo_original>
